<compile_context>
chip_gen: v7x
topology: tpu7x:2x2x1
jax: 0.10.0
libtpu: 0.0.40
codegen_flags: <defaults>
</compile_context>

<pallas_src>
import jax
import jax.numpy as jnp
from jax.experimental import pallas as pl
from jax.experimental.pallas import tpu as pltpu

_LANES = 128            # TPU lane width: last block dim => unmasked, lane-dense stores
_SUBLANES = 8           # f32 sublane granularity (the (8, 128) constraint)
_MAX_BLOCK_ROWS = 4096  # 4096 x 128 f32 tile = 2 MiB; double-buffered in+out ~8 MiB VMEM


# --------------------------------------------------------------------------
# Pallas kernel: identity (tiled copy)
# --------------------------------------------------------------------------
def _identity_kernel(x_ref, o_ref):
    o_ref[...] = x_ref[...]


def _choose_block_rows(rows: int):
    """Largest legal block row count (<= _MAX_BLOCK_ROWS) that tiles `rows` evenly.

    Returns None if no clean tiling exists (caller then falls back to `return x`).
    """
    if rows <= _MAX_BLOCK_ROWS:
        return rows  # single full-extent block: always a legal BlockSpec
    limit = (_MAX_BLOCK_ROWS // _SUBLANES) * _SUBLANES
    for br in range(limit, 0, -_SUBLANES):  # interior blocks must be (8, 128)-aligned
        if rows % br == 0:
            return br
    return None


def _tiled_copy(slab: jax.Array, block_rows: int) -> jax.Array:
    """Copy a (rows, 128) 32-bit slab through VMEM with a pipelined row grid."""
    rows, cols = slab.shape
    grid = (rows // block_rows,)
    return pl.pallas_call(
        _identity_kernel,
        out_shape=jax.ShapeDtypeStruct(slab.shape, slab.dtype),
        grid_spec=pltpu.PrefetchScalarGridSpec(
            num_scalar_prefetch=0,
            grid=grid,
            in_specs=[pl.BlockSpec((block_rows, cols), lambda i: (i, 0))],
            out_specs=pl.BlockSpec((block_rows, cols), lambda i: (i, 0)),
        ),
        compiler_params=pltpu.CompilerParams(
            dimension_semantics=("parallel",)),
    )(slab)


# --------------------------------------------------------------------------
# Forward pass wrapper (mirrors NoFeatureEng.forward)
# --------------------------------------------------------------------------
def no_feature_eng_forward(x: jax.Array, mode: str = "train",
                           materialize: bool = False) -> jax.Array:
    """NoFeatureEng.forward(x, mode): returns x unchanged (identity).

    By default this is a pure short-circuit (the op is a semantic no-op, so the
    fastest correct implementation is `return x`).  Set materialize=True to
    route the tensor through the tiled Pallas copy kernel (e.g. to force a
    fresh HBM buffer); shapes that would require padding or ragged handling
    still short-circuit, so no extra HBM passes are ever added.
    """
    del mode  # mode does not affect the forward pass
    if not materialize:
        return x
    if x.size == 0:
        return x

    n = x.size
    # Pallas copy path only when it is free to set up: 32-bit dtype and a flat
    # size that is already 128-lane aligned (reshape is then a no-op bitcast).
    if jnp.dtype(x.dtype).itemsize != 4 or n % _LANES != 0:
        return x

    rows = n // _LANES
    block_rows = _choose_block_rows(rows)
    if block_rows is None:
        return x

    slab = jnp.reshape(x, (rows, _LANES))        # contiguous reshape: no data movement
    out = _tiled_copy(slab, block_rows)
    return jnp.reshape(out, x.shape)


# TODO(synk): prox(t) in the original module is a literal `pass` (training-time
# no-op); there is nothing to translate for it.


# --------------------------------------------------------------------------
# Demo / correctness check
# --------------------------------------------------------------------------
if __name__ == "__main__":
    key = jax.random.PRNGKey(0)

    # Small input consistent with the module's usage (a batch of image-like data).
    x = jax.random.normal(key, (2, 4, 16, 16), dtype=jnp.float32)

    ok = True

    # Default path: pure identity short-circuit.
    y_fast = jax.block_until_ready(no_feature_eng_forward(x))
    ok &= y_fast.shape == x.shape and y_fast.dtype == x.dtype
    ok &= bool(jnp.array_equal(y_fast, x))

    # Materialized path: exercises the Pallas tiled-copy kernel.
    y_kern = jax.block_until_ready(no_feature_eng_forward(x, materialize=True))
    ok &= y_kern.shape == x.shape and y_kern.dtype == x.dtype
    ok &= bool(jnp.array_equal(y_kern, x))

    # Non-lane-aligned shape: short-circuits (no pad/slice HBM passes).
    key2 = jax.random.split(key)[0]
    x2 = jax.random.normal(key2, (3, 7, 5), dtype=jnp.float32)
    y2 = jax.block_until_ready(no_feature_eng_forward(x2, materialize=True))
    ok &= y2.shape == x2.shape and y2.dtype == x2.dtype
    ok &= bool(jnp.array_equal(y2, x2))

    if ok:
        print("KERNEL_OK")
    else:
        raise SystemExit("mismatch vs reference (identity)")
</pallas_src>

<mosaic_0001>
module attributes {stable_mosaic.version = 11 : i64} {
  func.func @_identity_kernel(%arg0: i32, %arg1: memref<16x128xf32, #tpu.memory_space<vmem>>, %arg2: memref<16x128xf32, #tpu.memory_space<vmem>>) attributes {dimension_semantics = [#tpu.dimension_semantics<parallel>], iteration_bounds = array<i64: 1>, scalar_prefetch = 0 : i64, scratch_operands = 0 : i64, tpu.core_type = #tpu.core_type<tc>, window_params = [{transform_indices = @transform_0, window_bounds = array<i64: 16, 128>}, {transform_indices = @transform_1, window_bounds = array<i64: 16, 128>}]} {
    %c0 = arith.constant 0 : index
    %c0_0 = arith.constant 0 : index
    %0 = vector.load %arg1[%c0, %c0_0] : memref<16x128xf32, #tpu.memory_space<vmem>>, vector<16x128xf32>
    %c0_1 = arith.constant 0 : index
    %c0_2 = arith.constant 0 : index
    %1 = vector.load %arg2[%c0_1, %c0_2] : memref<16x128xf32, #tpu.memory_space<vmem>>, vector<16x128xf32>
    tpu.vector_store %arg2[%c0_1, %c0_2], %0 {strides = array<i32>} : memref<16x128xf32, #tpu.memory_space<vmem>>, vector<16x128xf32>,
    return
  }
  func.func @transform_0(%arg0: i32) -> (i32, i32) {
    %c0_i32 = arith.constant 0 : i32
    %c0_i32_0 = arith.constant 0 : i32
    return %arg0, %c0_i32 : i32, i32
  }
  func.func @transform_1(%arg0: i32) -> (i32, i32) {
    %c0_i32 = arith.constant 0 : i32
    %c0_i32_0 = arith.constant 0 : i32
    return %arg0, %c0_i32 : i32, i32
  }
}

</mosaic_0001>

<llo_original>
// kernel: tpu_custom_call.1
$region0: #{tpu_custom_call.1}
  #allocation0 [shape = 'u32[]', space=smem, size = 0x4, offset = 0x4, fixed_abs, tag = 'smem constant byte address 0x4 - core index']
  #allocation1 [shape = 'u32[144,128]{1,0:T(1,128)}', space=vmem, size = 0x12000, scoped, tag = 'internal scratch']
  %s0 = inlined_call_operand.hbm [shape: f32[16,128], index: 0, kind: input, shape index: {}]
  %s1 = inlined_call_operand.hbm [shape: f32[16,128], index: 1, kind: output, shape index: {}]
  %s2 = sld [smem:[#allocation0]]
  $region18: #{tpu_custom_call.1} parent=0
    _
  %s4 = ssub.s32 1, %s2
  %s5 = scalar_select 0, %s4, %s2
  $region1: #{tpu_custom_call.1} parent=0
    #allocation2 [shape = 'u8[8192]{0}', space=vmem, size = 0x2000, scoped, tag = 'input window, operand 0, single buffered']
    #allocation3 [shape = 's32[1]{0}', space=sflag, size = 0x4, scoped, tag = 'scoped memory for tpu_custom_call.1']
    #allocation4 [shape = 's32[1]{0}', space=sflag, size = 0x4, scoped, tag = 'scoped memory for tpu_custom_call.1']
    #allocation5 [shape = 'u8[8192]{0}', space=vmem, size = 0x2000, scoped, tag = 'output window, operand 0, single buffered']
    %6 = vsyncpa [#allocation3], 0
    %7 = vsyncpa [#allocation4], 0
    // Predicated region
    $region2: #{tpu_custom_call.1} parent=1 // pred_check
      _
    $region3: #{tpu_custom_call.1} parent=1 // pred_check_branch
      %9 = sbr.rel (0) target = $region5
    $region4: #{tpu_custom_call.1} parent=1 // pred_region
      %s11 = ssub.s32 256, 256
      %12 = vsyncadd [#allocation3], %s11
      %s13 = sshll.u32 [#allocation2], 4
      %s14 = int_to_ptr.vmem [resolvable:$true] %s13
      %19 = dma.hbm_to_vmem [thread:$0]  %s0, 256, %s14, [#allocation3], 128, 128, 8
    $region5: #{tpu_custom_call.1} parent=1 // pred_fallthru
      _
    // Predicated region
    $region6: #{tpu_custom_call.1} parent=1 // pred_check
      _
    $region7: #{tpu_custom_call.1} parent=1 // pred_check_branch
      %21 = sbr.rel (0) target = $region9
    $region8: #{tpu_custom_call.1} parent=1 // pred_region
      %22 = dma.done [#allocation3], 256
    $region9: #{tpu_custom_call.1} parent=1 // pred_fallthru
      _
    %v23 = vld [vmem:[#allocation2] sm:$0xff]
    %v24 = vld [vmem:[#allocation2 + $0x8] sm:$0xff]
    %25 = vst [vmem:[#allocation5] sm:$0xff] %v23
    %26 = vst [vmem:[#allocation5 + $0x8] sm:$0xff] %v24
    // Predicated region
    $region10: #{tpu_custom_call.1} parent=1 // pred_check
      _
    $region11: #{tpu_custom_call.1} parent=1 // pred_check_branch
      %28 = sbr.rel (0) target = $region13
    $region12: #{tpu_custom_call.1} parent=1 // pred_region
      %s30 = ssub.s32 256, 256
      %31 = vsyncadd [#allocation4], %s30
      %s32 = sshll.u32 [#allocation5], 4
      %s33 = int_to_ptr.vmem [resolvable:$true] %s32
      %38 = dma.vmem_to_hbm [thread:$0]  %s33, 256, %s1, [#allocation4], 128, 128, 8
    $region13: #{tpu_custom_call.1} parent=1 // pred_fallthru
      _
    // Predicated region
    $region14: #{tpu_custom_call.1} parent=1 // pred_check
      _
    $region15: #{tpu_custom_call.1} parent=1 // pred_check_branch
      %40 = sbr.rel (0) target = $region17
    $region16: #{tpu_custom_call.1} parent=1 // pred_region
      %41 = dma.done [#allocation4], 256
    $region17: #{tpu_custom_call.1} parent=1 // pred_fallthru
      _
    %42 = vsyncpa [#allocation3], 1
    %43 = vsyncpa [#allocation4], 1

</llo_original>
